<compile_context>
chip_gen: v7x
topology: tpu7x:2x2x1
jax: 0.10.0
libtpu: 0.0.40
codegen_flags: <defaults>
</compile_context>

<pallas_src>
import math
from functools import partial

import jax
import jax.numpy as jnp
from jax.experimental import pallas as pl
from jax.experimental.pallas import tpu as pltpu


_TILE_BUDGET_BYTES = 4 << 20   # ~4 MiB per embed tile; double-buffered in+out+mask
                               # stays well inside the scoped VMEM limit on all gens.


# --------------------------------------------------------------------------- #
# Kernels (pure elementwise; one variant with the streamed dropout multiplier) #
# --------------------------------------------------------------------------- #
def _pe_kernel(embed_ref, pe_ref, o_ref, *, scale):
    x = embed_ref[...]
    o_ref[...] = (x * jnp.asarray(scale, x.dtype) + pe_ref[...]).astype(o_ref.dtype)


def _pe_dropout_kernel(embed_ref, pe_ref, mask_ref, o_ref, *, scale):
    x = embed_ref[...]
    x = x * jnp.asarray(scale, x.dtype) + pe_ref[...]
    o_ref[...] = (x * mask_ref[...]).astype(o_ref.dtype)


# --------------------------------------------------------------------------- #
# Helpers                                                                      #
# --------------------------------------------------------------------------- #
def make_pe_table(dim, max_len=5000, dtype=jnp.float32):
    """Deterministic sinusoidal table, identical to the PyTorch __init__."""
    position = jnp.arange(max_len, dtype=jnp.float32)[:, None]            # (L, 1)
    div_term = jnp.exp(jnp.arange(0, dim, 2, dtype=jnp.float32)
                       * -(math.log(10000.0) / dim))                      # (D/2,)
    angles = position * div_term                                          # (L, D/2)
    pe = jnp.zeros((max_len, dim), dtype=jnp.float32)
    pe = pe.at[:, 0::2].set(jnp.sin(angles))
    pe = pe.at[:, 1::2].set(jnp.cos(angles))
    return pe.astype(dtype)


def _largest_divisor_multiple(n, mult, cap):
    """Largest divisor of n that is a multiple of `mult` and <= cap (0 if none)."""
    best = 0
    k = 1
    while k * k <= n:
        if n % k == 0:
            for cand in (k, n // k):
                if cand % mult == 0 and cand <= cap and cand > best:
                    best = cand
        k += 1
    return best


def _vmem_limit_bytes():
    """Generation-aware scoped-VMEM request (safe fallback if query fails)."""
    try:
        phys = pltpu.get_tpu_info().vmem_capacity_bytes
    except Exception:
        phys = 64 << 20
    return (48 << 20) if phys >= (128 << 20) else (32 << 20)


# --------------------------------------------------------------------------- #
# Wrapper                                                                      #
# --------------------------------------------------------------------------- #
def position_embedding(embed, pe, *, dim, dropout_prob=0.0, training=False,
                       step=None, key=None):
    """Pallas implementation of PositionEmbedding.forward.

    embed: (B, S, D) array.  pe: (max_len, D) table from make_pe_table.
    step: optional python int (matches PyTorch's `if step:` truthiness).
    """
    B, S, D = embed.shape
    assert D == dim
    dtype = embed.dtype
    itemsize = jnp.dtype(dtype).itemsize
    sub = max(8, 32 // itemsize)          # sublane multiple: 8 f32, 16 bf16, 32 int8
    per_batch = S * D
    step_mode = bool(step)                # step=None/0 -> slice path, like PyTorch
    use_dropout = bool(training) and float(dropout_prob) > 0.0
    scale = math.sqrt(dim)

    drop_mask = None
    if use_dropout:
        # TODO(synk): in-kernel pltpu.prng_* dropout was removed because prng_seed
        # has no CPU/interpret lowering; the inverted-dropout multiplier is
        # generated here (grid-invariant) and streamed to the kernel instead.
        if key is None:
            key = jax.random.PRNGKey(0)
        keep = jax.random.bernoulli(key, 1.0 - float(dropout_prob), (B, S, D))
        drop_mask = keep.astype(dtype) * jnp.asarray(
            1.0 / (1.0 - float(dropout_prob)), dtype)

    kernel = partial(_pe_dropout_kernel if use_dropout else _pe_kernel, scale=scale)
    cparams = pltpu.CompilerParams(
        dimension_semantics=("parallel",),
        vmem_limit_bytes=_vmem_limit_bytes())

    # ---- preferred layout: lane- AND sublane-dense (rows, C) flatten ---------
    # Each batch's (S*D) elements are split into rows of C lanes (C % 128 == 0);
    # row tiles are multiples of the sublane packing, and the pe table is
    # addressed with a modular block index so it is never duplicated per batch.
    dense = None
    for C in (1024, 512, 256, 128):
        if per_batch % C:
            continue
        if step_mode and C % D:
            continue                       # pe period must fit a whole row
        P = per_batch // C                 # pe rows in the flattened layout
        rows = B * P
        cap_rows = max(sub, _TILE_BUDGET_BYTES // (C * itemsize))
        R = _largest_divisor_multiple(rows if step_mode else P, sub, cap_rows)
        if R:
            dense = (C, P, rows, R)
            break

    if dense is not None:
        C, P, rows, R = dense
        embed2 = embed.reshape(rows, C)
        emb_spec = pl.BlockSpec((R, C), lambda t: (t, 0))
        if step_mode:
            # One pe row, repeated to one lane-row; constant block index -> fetched once.
            pe2 = jnp.tile(pe[step].astype(dtype), C // D).reshape(1, C)
            pe_spec = pl.BlockSpec((1, C), lambda t: (0, 0))
        else:
            pe2 = pe[:S].astype(dtype).reshape(P, C)
            n_pe_blocks = P // R
            pe_spec = pl.BlockSpec((R, C), lambda t: (t % n_pe_blocks, 0))
        ins = [embed2, pe2]
        in_specs = [emb_spec, pe_spec]
        if use_dropout:
            ins.append(drop_mask.reshape(rows, C))
            in_specs.append(emb_spec)
        out2 = pl.pallas_call(
            kernel,
            out_shape=jax.ShapeDtypeStruct((rows, C), dtype),
            grid=(rows // R,),
            in_specs=in_specs,
            out_specs=emb_spec,
            compiler_params=cparams,
        )(*ins)
        return out2.reshape(B, S, D)

    # ---- fallback: natural (B, S, D) layout tiled along S --------------------
    cap_s = max(sub, _TILE_BUDGET_BYTES // max(1, B * D * itemsize))
    Rs = _largest_divisor_multiple(S, sub, cap_s)
    pad = 0
    S_work = S
    if Rs == 0:
        if B * S * D * itemsize <= _TILE_BUDGET_BYTES:
            Rs = S                         # tiny input: single full-array block
        else:
            # Guard: pad S so a bounded, aligned tile always exists instead of
            # collapsing to one huge double-buffered block (v7x 64 MiB VMEM).
            S_work = pl.cdiv(S, sub) * sub
            pad = S_work - S
            Rs = _largest_divisor_multiple(S_work, sub, cap_s) or sub

    x3 = embed if pad == 0 else jnp.pad(embed, ((0, 0), (0, pad), (0, 0)))
    emb_spec = pl.BlockSpec((B, Rs, D), lambda t: (0, t, 0))
    if step_mode:
        pe3 = pe[step].astype(dtype).reshape(1, 1, D)
        pe_spec = pl.BlockSpec((1, 1, D), lambda t: (0, 0, 0))
    else:
        pe_s = pe[:S].astype(dtype)
        if pad:
            pe_s = jnp.pad(pe_s, ((0, pad), (0, 0)))
        pe3 = pe_s.reshape(1, S_work, D)
        pe_spec = pl.BlockSpec((1, Rs, D), lambda t: (0, t, 0))
    ins = [x3, pe3]
    in_specs = [emb_spec, pe_spec]
    if use_dropout:
        m3 = drop_mask if pad == 0 else jnp.pad(drop_mask, ((0, 0), (0, pad), (0, 0)))
        ins.append(m3)
        in_specs.append(emb_spec)
    out3 = pl.pallas_call(
        kernel,
        out_shape=jax.ShapeDtypeStruct((B, S_work, D), dtype),
        grid=(S_work // Rs,),
        in_specs=in_specs,
        out_specs=emb_spec,
        compiler_params=cparams,
    )(*ins)
    return out3[:, :S, :] if pad else out3


# --------------------------------------------------------------------------- #
# Self-test                                                                    #
# --------------------------------------------------------------------------- #
if __name__ == "__main__":
    B, S, D = 2, 8, 32
    MAX_LEN = 64

    key = jax.random.PRNGKey(0)
    k_embed, k_drop = jax.random.split(key)
    embed = jax.random.normal(k_embed, (B, S, D), dtype=jnp.float32)
    pe = make_pe_table(D, max_len=MAX_LEN)

    # --- main path (step=None, eval) ---
    out = position_embedding(embed, pe, dim=D)
    out = jax.block_until_ready(out)
    ref = embed * math.sqrt(D) + pe[:S][None, :, :]
    assert out.shape == (B, S, D)
    assert jnp.allclose(out, ref, atol=1e-5, rtol=1e-5), "step=None path mismatch"

    # --- decode path (step=3, eval) ---
    out_step = position_embedding(embed, pe, dim=D, step=3)
    out_step = jax.block_until_ready(out_step)
    ref_step = embed * math.sqrt(D) + pe[3][None, None, :]
    assert jnp.allclose(out_step, ref_step, atol=1e-5, rtol=1e-5), "step path mismatch"

    # --- training path (inverted dropout) structural check ---
    p = 0.1
    out_tr = position_embedding(embed, pe, dim=D, dropout_prob=p,
                                training=True, key=k_drop)
    out_tr = jax.block_until_ready(out_tr)
    kept_ref = ref / (1.0 - p)
    is_zero = (out_tr == 0)
    is_kept = jnp.isclose(out_tr, kept_ref, atol=1e-5, rtol=1e-5)
    assert bool(jnp.all(is_zero | is_kept)), "dropout path mismatch"
    frac_dropped = float(jnp.mean(is_zero & ~is_kept))
    assert 0.0 < frac_dropped < 0.5, "dropout rate implausible"

    # --- lane+sublane dense flattened path (D multiple of 128) ---
    B2, S2, D2 = 2, 16, 128
    embed2 = jax.random.normal(k_embed, (B2, S2, D2), dtype=jnp.float32)
    pe2 = make_pe_table(D2, max_len=MAX_LEN)
    out2 = position_embedding(embed2, pe2, dim=D2)
    out2 = jax.block_until_ready(out2)
    ref2 = embed2 * math.sqrt(D2) + pe2[:S2][None, :, :]
    assert jnp.allclose(out2, ref2, atol=1e-4, rtol=1e-5), "dense path mismatch"
    out2s = position_embedding(embed2, pe2, dim=D2, step=5)
    out2s = jax.block_until_ready(out2s)
    ref2s = embed2 * math.sqrt(D2) + pe2[5][None, None, :]
    assert jnp.allclose(out2s, ref2s, atol=1e-4, rtol=1e-5), "dense step mismatch"

    print("KERNEL_OK")
</pallas_src>

<mosaic_0001>
module attributes {stable_mosaic.version = 11 : i64} {
  func.func @_pe_kernel(%arg0: i32, %arg1: memref<2x8x32xf32, #tpu.memory_space<vmem>>, %arg2: memref<1x8x32xf32, #tpu.memory_space<vmem>>, %arg3: memref<2x8x32xf32, #tpu.memory_space<vmem>>) attributes {dimension_semantics = [#tpu.dimension_semantics<parallel>], iteration_bounds = array<i64: 1>, scalar_prefetch = 0 : i64, scratch_operands = 0 : i64, tpu.core_type = #tpu.core_type<tc>, window_params = [{transform_indices = @transform_0, window_bounds = array<i64: 2, 8, 32>}, {transform_indices = @transform_1, window_bounds = array<i64: 1, 8, 32>}, {transform_indices = @transform_2, window_bounds = array<i64: 2, 8, 32>}]} {
    %c0 = arith.constant 0 : index
    %c0_0 = arith.constant 0 : index
    %c0_1 = arith.constant 0 : index
    %0 = vector.load %arg1[%c0, %c0_0, %c0_1] : memref<2x8x32xf32, #tpu.memory_space<vmem>>, vector<2x8x32xf32>
    %cst = arith.constant 5.65685415 : f32
    %1 = vector.broadcast %cst : f32 to vector<2x8x32xf32>
    %2 = arith.mulf %0, %1 : vector<2x8x32xf32>
    %c0_2 = arith.constant 0 : index
    %c0_3 = arith.constant 0 : index
    %c0_4 = arith.constant 0 : index
    %3 = vector.load %arg2[%c0_2, %c0_3, %c0_4] : memref<1x8x32xf32, #tpu.memory_space<vmem>>, vector<1x8x32xf32>
    %4 = vector.broadcast %3 : vector<1x8x32xf32> to vector<2x8x32xf32>
    %5 = arith.addf %2, %4 : vector<2x8x32xf32>
    %c0_5 = arith.constant 0 : index
    %c0_6 = arith.constant 0 : index
    %c0_7 = arith.constant 0 : index
    %6 = vector.load %arg3[%c0_5, %c0_6, %c0_7] : memref<2x8x32xf32, #tpu.memory_space<vmem>>, vector<2x8x32xf32>
    tpu.vector_store %arg3[%c0_5, %c0_6, %c0_7], %5 {strides = array<i32>} : memref<2x8x32xf32, #tpu.memory_space<vmem>>, vector<2x8x32xf32>,
    return
  }
  func.func @transform_0(%arg0: i32) -> (i32, i32, i32) {
    %c0_i32 = arith.constant 0 : i32
    %c0_i32_0 = arith.constant 0 : i32
    %c0_i32_1 = arith.constant 0 : i32
    return %c0_i32, %arg0, %c0_i32_0 : i32, i32, i32
  }
  func.func @transform_1(%arg0: i32) -> (i32, i32, i32) {
    %c0_i32 = arith.constant 0 : i32
    %c0_i32_0 = arith.constant 0 : i32
    %c0_i32_1 = arith.constant 0 : i32
    return %c0_i32, %arg0, %c0_i32_0 : i32, i32, i32
  }
  func.func @transform_2(%arg0: i32) -> (i32, i32, i32) {
    %c0_i32 = arith.constant 0 : i32
    %c0_i32_0 = arith.constant 0 : i32
    %c0_i32_1 = arith.constant 0 : i32
    return %c0_i32, %arg0, %c0_i32_0 : i32, i32, i32
  }
}

</mosaic_0001>

<llo_original>
// kernel: tpu_custom_call.1
$region0: #{tpu_custom_call.1}
  #allocation0 [shape = 'u32[]', space=smem, size = 0x4, offset = 0x4, fixed_abs, tag = 'smem constant byte address 0x4 - core index']
  #allocation1 [shape = 'u32[144,128]{1,0:T(1,128)}', space=vmem, size = 0x12000, scoped, tag = 'internal scratch']
  %s0 = inlined_call_operand.hbm [shape: f32[2,8,32], index: 0, kind: input, shape index: {}]
  %s1 = inlined_call_operand.hbm [shape: f32[1,8,32], index: 1, kind: input, shape index: {}]
  %s2 = inlined_call_operand.hbm [shape: f32[2,8,32], index: 2, kind: output, shape index: {}]
  %s3 = sld [smem:[#allocation0]]
  $region26: #{tpu_custom_call.1} parent=0
    _
  %s5 = ssub.s32 1, %s3
  %s6 = scalar_select 0, %s5, %s3
  $region1: #{tpu_custom_call.1} parent=0
    #allocation2 [shape = 'u8[8192]{0}', space=vmem, size = 0x2000, scoped, tag = 'input window, operand 0, single buffered']
    #allocation3 [shape = 's32[1]{0}', space=sflag, size = 0x4, scoped, tag = 'scoped memory for tpu_custom_call.1']
    #allocation4 [shape = 's32[1]{0}', space=sflag, size = 0x4, scoped, tag = 'scoped memory for tpu_custom_call.1']
    #allocation5 [shape = 'u8[4096]{0}', space=vmem, size = 0x1000, scoped, tag = 'input window, operand 1, single buffered']
    #allocation6 [shape = 's32[1]{0}', space=sflag, size = 0x4, scoped, tag = 'scoped memory for tpu_custom_call.1']
    #allocation7 [shape = 'u8[8192]{0}', space=vmem, size = 0x2000, scoped, tag = 'output window, operand 0, single buffered']
    %7 = vsyncpa [#allocation3], 0
    %8 = vsyncpa [#allocation6], 0
    %9 = vsyncpa [#allocation4], 0
    // Predicated region
    $region2: #{tpu_custom_call.1} parent=1 // pred_check
      _
    $region3: #{tpu_custom_call.1} parent=1 // pred_check_branch
      %11 = sbr.rel (0) target = $region5
    $region4: #{tpu_custom_call.1} parent=1 // pred_region
      %s13 = ssub.s32 256, 256
      %14 = vsyncadd [#allocation3], %s13
      %s15 = sshll.u32 [#allocation2], 4
      %s16 = int_to_ptr.vmem [resolvable:$true] %s15
      %21 = dma.hbm_to_vmem [thread:$0]  %s0, 256, %s16, [#allocation3], 128, 128, 8
    $region5: #{tpu_custom_call.1} parent=1 // pred_fallthru
      _
    // Predicated region
    $region6: #{tpu_custom_call.1} parent=1 // pred_check
      _
    $region7: #{tpu_custom_call.1} parent=1 // pred_check_branch
      %23 = sbr.rel (0) target = $region9
    $region8: #{tpu_custom_call.1} parent=1 // pred_region
      %s25 = ssub.s32 128, 128
      %26 = vsyncadd [#allocation6], %s25
      %s28 = sshll.u32 [#allocation5], 4
      %s29 = int_to_ptr.vmem [resolvable:$true] %s28
      %31 = dma.hbm_to_vmem [thread:$0]  %s1, 128, %s29, [#allocation6]
    $region9: #{tpu_custom_call.1} parent=1 // pred_fallthru
      _
    // Predicated region
    $region10: #{tpu_custom_call.1} parent=1 // pred_check
      _
    $region11: #{tpu_custom_call.1} parent=1 // pred_check_branch
      %33 = sbr.rel (0) target = $region13
    $region12: #{tpu_custom_call.1} parent=1 // pred_region
      %34 = dma.done [#allocation3], 256
    $region13: #{tpu_custom_call.1} parent=1 // pred_fallthru
      _
    // Predicated region
    $region14: #{tpu_custom_call.1} parent=1 // pred_check
      _
    $region15: #{tpu_custom_call.1} parent=1 // pred_check_branch
      %36 = sbr.rel (0) target = $region17
    $region16: #{tpu_custom_call.1} parent=1 // pred_region
      %37 = dma.done [#allocation6], 128
    $region17: #{tpu_custom_call.1} parent=1 // pred_fallthru
      _
    %v38 = vld [vmem:[#allocation2] sm:$0xff]
    %v39 = vld [vmem:[#allocation2 + $0x8] sm:$0xff]
    %v40 = vmul.f32 %v38, 5.656854
    %v41 = vmul.f32 %v39, 5.656854
    %v42 = vld [vmem:[#allocation5] sm:$0xff]
    %v43 = vadd.f32 %v40, %v42
    %v44 = vadd.f32 %v41, %v42
    %vm45 = vcmask 261120
    %46 = vst.msk [vmem:[#allocation7] sm:$0xff] %vm45, %v43
    %47 = vst.msk [vmem:[#allocation7 + $0x8] sm:$0xff] %vm45, %v44
    // Predicated region
    $region18: #{tpu_custom_call.1} parent=1 // pred_check
      _
    $region19: #{tpu_custom_call.1} parent=1 // pred_check_branch
      %49 = sbr.rel (0) target = $region21
    $region20: #{tpu_custom_call.1} parent=1 // pred_region
      %s51 = ssub.s32 256, 256
      %52 = vsyncadd [#allocation4], %s51
      %s53 = sshll.u32 [#allocation7], 4
      %s54 = int_to_ptr.vmem [resolvable:$true] %s53
      %59 = dma.vmem_to_hbm [thread:$0]  %s54, 256, %s2, [#allocation4], 128, 128, 8
    $region21: #{tpu_custom_call.1} parent=1 // pred_fallthru
      _
    // Predicated region
    $region22: #{tpu_custom_call.1} parent=1 // pred_check
      _
    $region23: #{tpu_custom_call.1} parent=1 // pred_check_branch
      %61 = sbr.rel (0) target = $region25
    $region24: #{tpu_custom_call.1} parent=1 // pred_region
      %62 = dma.done [#allocation4], 256
    $region25: #{tpu_custom_call.1} parent=1 // pred_fallthru
      _
    %63 = vsyncpa [#allocation3], 1
    %64 = vsyncpa [#allocation6], 1
    %65 = vsyncpa [#allocation4], 1

</llo_original>
